<compile_context>
chip_gen: v6e
topology: v6e:2x2x1
jax: 0.10.0
libtpu: 0.0.40
codegen_flags: <defaults>
</compile_context>

<pallas_src>
import jax
import jax.numpy as jnp
from jax.experimental import pallas as pl
from jax.experimental.pallas import tpu as pltpu


def _round_up(x: int, m: int) -> int:
    return ((x + m - 1) // m) * m


def _disc_kernel(x_ref, w1_ref, b1_ref, w2_ref, b2_ref, out_ref, h_acc):
    # x_ref:  (TM, TK)   bf16  flattened-image tile
    # w1_ref: (TK, Hp)   bf16  first linear weight tile (hidden padded to Hp)
    # b1_ref: (1, Hp)    f32   first linear bias (VMEM, resident)
    # w2_ref: (1, Hp)    f32   second linear weight, transposed + padded (resident)
    # b2_ref: (1, 1)     f32   second linear bias (SMEM scalar)
    # out_ref:(TM, 1)    f32   logits tile
    # h_acc:  (TM, Hp)   f32   VMEM accumulator across the K grid axis
    k = pl.program_id(1)

    @pl.when(k == 0)
    def _init():
        h_acc[...] = jnp.zeros_like(h_acc)

    # MXU matmul: bf16 operands, f32 accumulation.
    h_acc[...] += jnp.dot(x_ref[...], w1_ref[...],
                          preferred_element_type=jnp.float32)

    @pl.when(k == pl.num_programs(1) - 1)
    def _finalize():
        h = h_acc[...] + b1_ref[...]                       # (TM, Hp), VPU
        h = jnp.where(h >= 0.0, h, 0.2 * h)                # LeakyReLU(0.2)
        # Second layer has output width 1 -> VPU multiply + row reduction
        # instead of a 1-lane MXU matmul.
        logits = jnp.sum(h * w2_ref[...], axis=-1, keepdims=True)
        out_ref[...] = (logits + b2_ref[0, 0]).astype(out_ref.dtype)


def discriminator_forward(images, w1, b1, w2, b2):
    """images: (N, C, H, W) -> (N, 1) float32 logits."""
    n = images.shape[0]
    d = images.shape[1] * images.shape[2] * images.shape[3]
    hidden = w1.shape[1]

    x_flat = images.reshape(n, d)                           # == torch .view(N, -1)

    # --- derive padded sizes / tile sizes -----------------------------------
    # Lane-pad hidden to a multiple of 128 (lane-dense post-matmul work).
    h_pad = _round_up(hidden, 128)

    # Contraction tiling: pad D to a multiple of 128, then pick TK.
    d_pad = _round_up(d, 128)
    if d_pad <= 1024:
        tk = d_pad                                          # single K step
    else:
        tk = 128
        for cand in (1024, 512, 384, 256):
            if d_pad % cand == 0:
                tk = cand
                break

    # Batch tiling: TM multiple of 8 (f32 sublane); 128 for large batches.
    tm = 128 if n >= 128 else _round_up(max(n, 8), 8)
    n_pad = _round_up(n, tm)

    # --- zero-pad operands (padding contributes exactly 0 to the logits) ----
    # bf16 for the two big matmul operands (half the DMA bytes, MXU fast path);
    # f32 for the small post-matmul VPU operands.
    x_p = jnp.pad(x_flat.astype(jnp.bfloat16),
                  ((0, n_pad - n), (0, d_pad - d)))
    w1_p = jnp.pad(w1.astype(jnp.bfloat16),
                   ((0, d_pad - d), (0, h_pad - hidden)))
    b1_p = jnp.pad(b1.astype(jnp.float32).reshape(1, hidden),
                   ((0, 0), (0, h_pad - hidden)))
    w2_p = jnp.pad(w2.astype(jnp.float32).reshape(1, hidden),
                   ((0, 0), (0, h_pad - hidden)))
    b2_p = b2.astype(jnp.float32).reshape(1, 1)

    grid = (n_pad // tm, d_pad // tk)

    out = pl.pallas_call(
        _disc_kernel,
        out_shape=jax.ShapeDtypeStruct((n_pad, 1), jnp.float32),
        grid_spec=pltpu.PrefetchScalarGridSpec(
            num_scalar_prefetch=0,
            grid=grid,
            in_specs=[
                # x tile streams over (batch, K); pipelined.
                pl.BlockSpec((tm, tk), lambda i, k: (i, k)),
                # w1 tile streams over K only.
                pl.BlockSpec((tk, h_pad), lambda i, k: (k, 0)),
                # b1 / w2: constant block index -> stay in VMEM for all steps.
                pl.BlockSpec((1, h_pad), lambda i, k: (0, 0)),
                pl.BlockSpec((1, h_pad), lambda i, k: (0, 0)),
                # b2: (1,1) scalar in SMEM, no padded VMEM tile / DMA.
                pl.BlockSpec(memory_space=pltpu.MemorySpace.SMEM),
            ],
            out_specs=pl.BlockSpec((tm, 1), lambda i, k: (i, 0)),
            scratch_shapes=[pltpu.VMEM((tm, h_pad), jnp.float32)],
        ),
        compiler_params=pltpu.CompilerParams(
            dimension_semantics=("parallel", "arbitrary"),
            vmem_limit_bytes=32 << 20,
        ),
    )(x_p, w1_p, b1_p, w2_p, b2_p)

    return out[:n]


def init_params(image_dim, image_channels, hidden, key):
    d = image_channels * image_dim * image_dim
    k1, k2, k3, k4 = jax.random.split(key, 4)
    # Deterministic small-scale init (synthetic weights, no checkpoint).
    w1 = jax.random.normal(k1, (d, hidden), jnp.float32) * 0.02
    b1 = jax.random.normal(k2, (hidden,), jnp.float32) * 0.02
    w2 = jax.random.normal(k3, (hidden, 1), jnp.float32) * 0.02
    b2 = jax.random.normal(k4, (1,), jnp.float32) * 0.02
    return w1, b1, w2, b2


if __name__ == "__main__":
    image_dim = 16
    image_channels = 3
    hidden = 32
    batch = 2

    key = jax.random.PRNGKey(0)
    k_img, k_par = jax.random.split(key)
    images = jax.random.normal(
        k_img, (batch, image_channels, image_dim, image_dim), jnp.float32
    )
    w1, b1, w2, b2 = init_params(image_dim, image_channels, hidden, k_par)

    logits = discriminator_forward(images, w1, b1, w2, b2)
    logits = jax.block_until_ready(logits)

    # Pure-JAX f32 reference of the same forward math.
    x_flat = images.reshape(batch, -1)
    h_ref = x_flat @ w1 + b1[None, :]
    h_ref = jnp.where(h_ref >= 0.0, h_ref, 0.2 * h_ref)
    ref = h_ref @ w2 + b2[None, :]

    assert logits.shape == (batch, 1)
    # Tolerance loosened vs. pure-f32: first matmul uses bf16 operands
    # (f32 accumulation).
    assert jnp.allclose(logits, ref, atol=1e-2, rtol=1e-2), (logits, ref)

    print("KERNEL_OK")
</pallas_src>

<mosaic_0001>
module attributes {stable_mosaic.version = 11 : i64} {
  func.func @_disc_kernel(%arg0: i32, %arg1: i32, %arg2: memref<8x768xbf16, #tpu.memory_space<vmem>>, %arg3: memref<768x128xbf16, #tpu.memory_space<vmem>>, %arg4: memref<1x128xf32, #tpu.memory_space<vmem>>, %arg5: memref<1x128xf32, #tpu.memory_space<vmem>>, %arg6: memref<1x1xf32, #tpu.memory_space<smem>>, %arg7: memref<8x1xf32, #tpu.memory_space<vmem>>, %arg8: memref<8x128xf32, #tpu.memory_space<vmem>>) attributes {dimension_semantics = [#tpu.dimension_semantics<parallel>, #tpu.dimension_semantics<arbitrary>], iteration_bounds = array<i64: 1, 1>, scalar_prefetch = 0 : i64, scratch_operands = 1 : i64, tpu.core_type = #tpu.core_type<tc>, window_params = [{transform_indices = @transform_0, window_bounds = array<i64: 8, 768>}, {transform_indices = @transform_1, window_bounds = array<i64: 768, 128>}, {pipeline_mode = #tpu.pipeline_mode<synchronous>, transform_indices = @transform_2, window_bounds = array<i64: 1, 128>}, {pipeline_mode = #tpu.pipeline_mode<synchronous>, transform_indices = @transform_3, window_bounds = array<i64: 1, 128>}, {transform_indices = @transform_4, window_bounds = array<i64: 1, 1>}, {transform_indices = @transform_5, window_bounds = array<i64: 8, 1>}]} {
    %c0_i32 = arith.constant 0 : i32
    %0 = arith.cmpi eq, %arg1, %c0_i32 : i32
    %1 = arith.extui %0 : i1 to i32
    %c0_i32_0 = arith.constant 0 : i32
    %2 = arith.cmpi ne, %1, %c0_i32_0 : i32
    scf.if %2 {
      %cst_10 = arith.constant 0.000000e+00 : f32
      %12 = vector.broadcast %cst_10 : f32 to vector<8x128xf32>
      %c0_11 = arith.constant 0 : index
      %c0_12 = arith.constant 0 : index
      %13 = vector.load %arg8[%c0_11, %c0_12] : memref<8x128xf32, #tpu.memory_space<vmem>>, vector<8x128xf32>
      tpu.vector_store %arg8[%c0_11, %c0_12], %12 {strides = array<i32>} : memref<8x128xf32, #tpu.memory_space<vmem>>, vector<8x128xf32>,
    } else {
    }
    %c0 = arith.constant 0 : index
    %c0_1 = arith.constant 0 : index
    %3 = vector.load %arg8[%c0, %c0_1] : memref<8x128xf32, #tpu.memory_space<vmem>>, vector<8x128xf32>
    %c0_2 = arith.constant 0 : index
    %c0_3 = arith.constant 0 : index
    %4 = vector.load %arg2[%c0_2, %c0_3] : memref<8x768xbf16, #tpu.memory_space<vmem>>, vector<8x768xbf16>
    %c0_4 = arith.constant 0 : index
    %c0_5 = arith.constant 0 : index
    %5 = vector.load %arg3[%c0_4, %c0_5] : memref<768x128xbf16, #tpu.memory_space<vmem>>, vector<768x128xbf16>
    %cst = arith.constant dense<0.000000e+00> : vector<8x128xf32>
    %6 = tpu.matmul %4, %5, %cst {dimension_numbers = #tpu.dot_dimension_numbers<[1], [0], [0], [1], [0, 0, 1, 1], [], []>} : vector<8x768xbf16>, vector<768x128xbf16>, vector<8x128xf32> -> vector<8x128xf32>
    %7 = arith.addf %3, %6 : vector<8x128xf32>
    %c0_6 = arith.constant 0 : index
    %c0_7 = arith.constant 0 : index
    %8 = vector.load %arg8[%c0_6, %c0_7] : memref<8x128xf32, #tpu.memory_space<vmem>>, vector<8x128xf32>
    tpu.vector_store %arg8[%c0_6, %c0_7], %7 {strides = array<i32>} : memref<8x128xf32, #tpu.memory_space<vmem>>, vector<8x128xf32>,
    %c0_i32_8 = arith.constant 0 : i32
    %9 = arith.cmpi eq, %arg1, %c0_i32_8 : i32
    %10 = arith.extui %9 : i1 to i32
    %c0_i32_9 = arith.constant 0 : i32
    %11 = arith.cmpi ne, %10, %c0_i32_9 : i32
    scf.if %11 {
      %c0_10 = arith.constant 0 : index
      %c0_11 = arith.constant 0 : index
      %12 = vector.load %arg8[%c0_10, %c0_11] : memref<8x128xf32, #tpu.memory_space<vmem>>, vector<8x128xf32>
      %c0_12 = arith.constant 0 : index
      %c0_13 = arith.constant 0 : index
      %13 = vector.load %arg4[%c0_12, %c0_13] : memref<1x128xf32, #tpu.memory_space<vmem>>, vector<1x128xf32>
      %14 = vector.broadcast %13 : vector<1x128xf32> to vector<8x128xf32>
      %15 = arith.addf %12, %14 : vector<8x128xf32>
      %cst_14 = arith.constant 0.000000e+00 : f32
      %16 = vector.broadcast %cst_14 : f32 to vector<8x128xf32>
      %17 = arith.cmpf oge, %15, %16 : vector<8x128xf32>
      %cst_15 = arith.constant 2.000000e-01 : f32
      %18 = vector.broadcast %cst_15 : f32 to vector<8x128xf32>
      %19 = arith.mulf %18, %15 : vector<8x128xf32>
      %20 = arith.select %17, %15, %19 : vector<8x128xi1>, vector<8x128xf32>
      %c0_16 = arith.constant 0 : index
      %c0_17 = arith.constant 0 : index
      %21 = vector.load %arg5[%c0_16, %c0_17] : memref<1x128xf32, #tpu.memory_space<vmem>>, vector<1x128xf32>
      %22 = vector.broadcast %21 : vector<1x128xf32> to vector<8x128xf32>
      %23 = arith.mulf %20, %22 : vector<8x128xf32>
      %cst_18 = arith.constant dense<0.000000e+00> : vector<8xf32>
      %24 = vector.multi_reduction <add>, %23, %cst_18 [1] : vector<8x128xf32> to vector<8xf32>
      %25 = vector.shape_cast %24 : vector<8xf32> to vector<8x1xf32>
      %c0_19 = arith.constant 0 : index
      %c0_20 = arith.constant 0 : index
      %26 = memref.load %arg6[%c0_19, %c0_20] : memref<1x1xf32, #tpu.memory_space<smem>>
      %27 = vector.broadcast %26 : f32 to vector<8x1xf32>
      %28 = arith.addf %25, %27 : vector<8x1xf32>
      %c0_21 = arith.constant 0 : index
      %c0_22 = arith.constant 0 : index
      %29 = vector.load %arg7[%c0_21, %c0_22] : memref<8x1xf32, #tpu.memory_space<vmem>>, vector<8x1xf32>
      tpu.vector_store %arg7[%c0_21, %c0_22], %28 {strides = array<i32>} : memref<8x1xf32, #tpu.memory_space<vmem>>, vector<8x1xf32>,
    } else {
    }
    return
  }
  func.func @transform_0(%arg0: i32, %arg1: i32) -> (i32, i32) {
    %c0_i32 = arith.constant 0 : i32
    return %arg0, %arg1 : i32, i32
  }
  func.func @transform_1(%arg0: i32, %arg1: i32) -> (i32, i32) {
    %c0_i32 = arith.constant 0 : i32
    %c0_i32_0 = arith.constant 0 : i32
    return %arg1, %c0_i32 : i32, i32
  }
  func.func @transform_2(%arg0: i32, %arg1: i32) -> (i32, i32) {
    %c0_i32 = arith.constant 0 : i32
    %c0_i32_0 = arith.constant 0 : i32
    %c0_i32_1 = arith.constant 0 : i32
    return %c0_i32, %c0_i32_0 : i32, i32
  }
  func.func @transform_3(%arg0: i32, %arg1: i32) -> (i32, i32) {
    %c0_i32 = arith.constant 0 : i32
    %c0_i32_0 = arith.constant 0 : i32
    %c0_i32_1 = arith.constant 0 : i32
    return %c0_i32, %c0_i32_0 : i32, i32
  }
  func.func @transform_4(%arg0: i32, %arg1: i32) -> (i32, i32) {
    %c0_i32 = arith.constant 0 : i32
    %c0_i32_0 = arith.constant 0 : i32
    %c0_i32_1 = arith.constant 0 : i32
    return %c0_i32, %c0_i32_0 : i32, i32
  }
  func.func @transform_5(%arg0: i32, %arg1: i32) -> (i32, i32) {
    %c0_i32 = arith.constant 0 : i32
    %c0_i32_0 = arith.constant 0 : i32
    return %arg0, %c0_i32 : i32, i32
  }
}

</mosaic_0001>

<llo_original>
// kernel: tpu_custom_call.1
$region0: #{tpu_custom_call.1}
  #allocation0 [shape = 'u32[]', space=smem, size = 0x4, offset = 0x4, fixed_abs, tag = 'smem constant byte address 0x4 - core index']
  #allocation1 [shape = 'u32[144,128]{1,0:T(1,128)}', space=vmem, size = 0x12000, scoped, tag = 'internal scratch']
  #allocation2 [shape = 'f32[8,128]{1,0:T(8,128)}', space=vmem, size = 0x1000, scoped, tag = 'scratch operand']
  #allocation3 [shape = 'f32[1,1]{1,0:T(1,128)S(6)}', space=smem, size = 0x200, scoped, tag = 'scoped memory for tpu_custom_call.1']
  %s0 = inlined_call_operand.hbm [shape: bf16[8,768], index: 0, kind: input, shape index: {}]
  %s1 = inlined_call_operand.hbm [shape: bf16[768,128], index: 1, kind: input, shape index: {}]
  %s2 = inlined_call_operand.vmem [shape: f32[1,128], index: 2, kind: input, shape index: {}]
  %s3 = inlined_call_operand.vmem [shape: f32[1,128], index: 3, kind: input, shape index: {}]
  %s4 = inlined_call_operand.<no memory space> [shape: f32[1,1], index: 4, kind: input, shape index: {}]
  %s5 = inlined_call_operand.vmem [shape: f32[8,1], index: 5, kind: output, shape index: {}]
  %s6 = sld [smem:[#allocation0]]
  $region46: #{tpu_custom_call.1} parent=0
    _
  %s8 = ssub.s32 1, %s6
  %s9 = scalar_select 0, %s8, %s6
  %10 = sst [smem:[#allocation3]] %s4
  $region1: #{tpu_custom_call.1} parent=0
    #allocation4 [shape = 'u8[12288]{0}', space=vmem, size = 0x3000, scoped, tag = 'input window, operand 0, single buffered']
    #allocation5 [shape = 's32[1]{0}', space=sflag, size = 0x4, scoped, tag = 'scoped memory for tpu_custom_call.1']
    #allocation6 [shape = 'u8[196608]{0}', space=vmem, size = 0x30000, scoped, tag = 'input window, operand 1, single buffered']
    #allocation7 [shape = 's32[1]{0}', space=sflag, size = 0x4, scoped, tag = 'scoped memory for tpu_custom_call.1']
    %11 = vsyncpa [#allocation5], 0
    %12 = vsyncpa [#allocation7], 0
    // Predicated region
    $region2: #{tpu_custom_call.1} parent=1 // pred_check
      _
    $region3: #{tpu_custom_call.1} parent=1 // pred_check_branch
      %14 = sbr.rel (0) target = $region5
    $region4: #{tpu_custom_call.1} parent=1 // pred_region
      %s16 = ssub.s32 384, 384
      %17 = vsyncadd [#allocation5], %s16
      %s19 = sshll.u32 [#allocation4], 4
      %s20 = int_to_ptr.vmem [resolvable:$true] %s19
      %22 = dma.hbm_to_vmem [thread:$0]  %s0, 384, %s20, [#allocation5]
    $region5: #{tpu_custom_call.1} parent=1 // pred_fallthru
      _
    // Predicated region
    $region6: #{tpu_custom_call.1} parent=1 // pred_check
      _
    $region7: #{tpu_custom_call.1} parent=1 // pred_check_branch
      %24 = sbr.rel (0) target = $region9
    $region8: #{tpu_custom_call.1} parent=1 // pred_region
      %s26 = ssub.s32 6144, 6144
      %27 = vsyncadd [#allocation7], %s26
      %s28 = sshll.u32 [#allocation6], 4
      %s29 = int_to_ptr.vmem [resolvable:$true] %s28
      %34 = dma.hbm_to_vmem [thread:$0]  %s1, 6144, %s29, [#allocation7], 64, 64, 4
    $region9: #{tpu_custom_call.1} parent=1 // pred_fallthru
      _
    // Predicated region
    $region10: #{tpu_custom_call.1} parent=1 // pred_check
      _
    $region11: #{tpu_custom_call.1} parent=1 // pred_check_branch
      %36 = sbr.rel (0) target = $region13
    $region12: #{tpu_custom_call.1} parent=1 // pred_region
      _
    $region13: #{tpu_custom_call.1} parent=1 // pred_fallthru
      _
    // Predicated region
    $region14: #{tpu_custom_call.1} parent=1 // pred_check
      _
    $region15: #{tpu_custom_call.1} parent=1 // pred_check_branch
      %38 = sbr.rel (0) target = $region17
    $region16: #{tpu_custom_call.1} parent=1 // pred_region
      _
    $region17: #{tpu_custom_call.1} parent=1 // pred_fallthru
      _
    // Predicated region
    $region18: #{tpu_custom_call.1} parent=1 // pred_check
      _
    $region19: #{tpu_custom_call.1} parent=1 // pred_check_branch
      %40 = sbr.rel (0) target = $region21
    $region20: #{tpu_custom_call.1} parent=1 // pred_region
      _
    $region21: #{tpu_custom_call.1} parent=1 // pred_fallthru
      _
    // Predicated region
    $region22: #{tpu_custom_call.1} parent=1 // pred_check
      _
    $region23: #{tpu_custom_call.1} parent=1 // pred_check_branch
      %42 = sbr.rel (0) target = $region25
    $region24: #{tpu_custom_call.1} parent=1 // pred_region
      %43 = dma.done [#allocation5], 384
    $region25: #{tpu_custom_call.1} parent=1 // pred_fallthru
      _
    // Predicated region
    $region26: #{tpu_custom_call.1} parent=1 // pred_check
      _
    $region27: #{tpu_custom_call.1} parent=1 // pred_check_branch
      %45 = sbr.rel (0) target = $region29
    $region28: #{tpu_custom_call.1} parent=1 // pred_region
      %46 = dma.done [#allocation7], 6144
    $region29: #{tpu_custom_call.1} parent=1 // pred_fallthru
      _
    %p48 = scmp.eq.s32.totalorder 0, 0
    // Predicated region
    $region30: #{tpu_custom_call.1} parent=1 // pred_check
      %p49 = pneg %p48
    $region31: #{tpu_custom_call.1} parent=1 // pred_check_branch
      %51 = sbr.rel (%p49) target = $region33
    $region32: #{tpu_custom_call.1} parent=1 // pred_region
      %52 = vst [vmem:[#allocation2] sm:$0xff] 0.0
    $region33: #{tpu_custom_call.1} parent=1 // pred_fallthru
      _
    %v53 = vld [vmem:[#allocation2] sm:$0xff]
    %v54 = vld [vmem:[#allocation4] sm:$0xff]
    %v55 = vld [vmem:[#allocation4 + $0x8] sm:$0xff]
    %v56 = vld [vmem:[#allocation4 + $0x10] sm:$0xff]
    %v57 = vld [vmem:[#allocation6] sm:$0xf]
    %v58 = vld [vmem:[#allocation6 + $0x4] sm:$0xf]
    %v59 = vld [vmem:[#allocation6 + $0x8] sm:$0xf]
    %v60 = vld [vmem:[#allocation6 + $0xc] sm:$0xf]
    %v61 = vld [vmem:[#allocation6 + $0x10] sm:$0xf]
    %v62 = vld [vmem:[#allocation6 + $0x14] sm:$0xf]
    %v63 = vld [vmem:[#allocation6 + $0x18] sm:$0xf]
    %v64 = vld [vmem:[#allocation6 + $0x1c] sm:$0xf]
    %v65 = vld [vmem:[#allocation6 + $0x20] sm:$0xf]
    %v66 = vld [vmem:[#allocation6 + $0x24] sm:$0xf]
    %v67 = vld [vmem:[#allocation6 + $0x28] sm:$0xf]
    %v68 = vld [vmem:[#allocation6 + $0x2c] sm:$0xf]
    %v69 = vld [vmem:[#allocation6 + $0x30] sm:$0xf]
    %v70 = vld [vmem:[#allocation6 + $0x34] sm:$0xf]
    %v71 = vld [vmem:[#allocation6 + $0x38] sm:$0xf]
    %v72 = vld [vmem:[#allocation6 + $0x3c] sm:$0xf]
    %v73 = vld [vmem:[#allocation6 + $0x40] sm:$0xf]
    %v74 = vld [vmem:[#allocation6 + $0x44] sm:$0xf]
    %v75 = vld [vmem:[#allocation6 + $0x48] sm:$0xf]
    %v76 = vld [vmem:[#allocation6 + $0x4c] sm:$0xf]
    %v77 = vld [vmem:[#allocation6 + $0x50] sm:$0xf]
    %v78 = vld [vmem:[#allocation6 + $0x54] sm:$0xf]
    %v79 = vld [vmem:[#allocation6 + $0x58] sm:$0xf]
    %v80 = vld [vmem:[#allocation6 + $0x5c] sm:$0xf]
    %v81 = vld [vmem:[#allocation6 + $0x60] sm:$0xf]
    %v82 = vld [vmem:[#allocation6 + $0x64] sm:$0xf]
    %v83 = vld [vmem:[#allocation6 + $0x68] sm:$0xf]
    %v84 = vld [vmem:[#allocation6 + $0x6c] sm:$0xf]
    %v85 = vld [vmem:[#allocation6 + $0x70] sm:$0xf]
    %v86 = vld [vmem:[#allocation6 + $0x74] sm:$0xf]
    %v87 = vld [vmem:[#allocation6 + $0x78] sm:$0xf]
    %v88 = vld [vmem:[#allocation6 + $0x7c] sm:$0xf]
    %v89 = vld [vmem:[#allocation6 + $0x80] sm:$0xf]
    %v90 = vld [vmem:[#allocation6 + $0x84] sm:$0xf]
    %v91 = vld [vmem:[#allocation6 + $0x88] sm:$0xf]
    %v92 = vld [vmem:[#allocation6 + $0x8c] sm:$0xf]
    %v93 = vld [vmem:[#allocation6 + $0x90] sm:$0xf]
    %v94 = vld [vmem:[#allocation6 + $0x94] sm:$0xf]
    %v95 = vld [vmem:[#allocation6 + $0x98] sm:$0xf]
    %v96 = vld [vmem:[#allocation6 + $0x9c] sm:$0xf]
    %v97 = vld [vmem:[#allocation6 + $0xa0] sm:$0xf]
    %v98 = vld [vmem:[#allocation6 + $0xa4] sm:$0xf]
    %v99 = vld [vmem:[#allocation6 + $0xa8] sm:$0xf]
    %v100 = vld [vmem:[#allocation6 + $0xac] sm:$0xf]
    %v101 = vld [vmem:[#allocation6 + $0xb0] sm:$0xf]
    %v102 = vld [vmem:[#allocation6 + $0xb4] sm:$0xf]
    %v103 = vld [vmem:[#allocation6 + $0xb8] sm:$0xf]
    %v104 = vld [vmem:[#allocation6 + $0xbc] sm:$0xf]
    %v105 = vld [vmem:[#allocation6 + $0xc0] sm:$0xf]
    %v106 = vld [vmem:[#allocation6 + $0xc4] sm:$0xf]
    %v107 = vld [vmem:[#allocation6 + $0xc8] sm:$0xf]
    %v108 = vld [vmem:[#allocation6 + $0xcc] sm:$0xf]
    %v109 = vld [vmem:[#allocation6 + $0xd0] sm:$0xf]
    %v110 = vld [vmem:[#allocation6 + $0xd4] sm:$0xf]
    %v111 = vld [vmem:[#allocation6 + $0xd8] sm:$0xf]
    %v112 = vld [vmem:[#allocation6 + $0xdc] sm:$0xf]
    %v113 = vld [vmem:[#allocation6 + $0xe0] sm:$0xf]
    %v114 = vld [vmem:[#allocation6 + $0xe4] sm:$0xf]
    %v115 = vld [vmem:[#allocation6 + $0xe8] sm:$0xf]
    %v116 = vld [vmem:[#allocation6 + $0xec] sm:$0xf]
    %v117 = vld [vmem:[#allocation6 + $0xf0] sm:$0xf]
    %v118 = vld [vmem:[#allocation6 + $0xf4] sm:$0xf]
    %v119 = vld [vmem:[#allocation6 + $0xf8] sm:$0xf]
    %v120 = vld [vmem:[#allocation6 + $0xfc] sm:$0xf]
    %v121 = vld [vmem:[#allocation6 + $0x100] sm:$0xf]
    %v122 = vld [vmem:[#allocation6 + $0x104] sm:$0xf]
    %v123 = vld [vmem:[#allocation6 + $0x108] sm:$0xf]
    %v124 = vld [vmem:[#allocation6 + $0x10c] sm:$0xf]
    %v125 = vld [vmem:[#allocation6 + $0x110] sm:$0xf]
    %v126 = vld [vmem:[#allocation6 + $0x114] sm:$0xf]
    %v127 = vld [vmem:[#allocation6 + $0x118] sm:$0xf]
    %v128 = vld [vmem:[#allocation6 + $0x11c] sm:$0xf]
    %v129 = vld [vmem:[#allocation6 + $0x120] sm:$0xf]
    %v130 = vld [vmem:[#allocation6 + $0x124] sm:$0xf]
    %v131 = vld [vmem:[#allocation6 + $0x128] sm:$0xf]
    %v132 = vld [vmem:[#allocation6 + $0x12c] sm:$0xf]
    %v133 = vld [vmem:[#allocation6 + $0x130] sm:$0xf]
    %v134 = vld [vmem:[#allocation6 + $0x134] sm:$0xf]
    %v135 = vld [vmem:[#allocation6 + $0x138] sm:$0xf]
    %v136 = vld [vmem:[#allocation6 + $0x13c] sm:$0xf]
    %v137 = vld [vmem:[#allocation6 + $0x140] sm:$0xf]
    %v138 = vld [vmem:[#allocation6 + $0x144] sm:$0xf]
    %v139 = vld [vmem:[#allocation6 + $0x148] sm:$0xf]
    %v140 = vld [vmem:[#allocation6 + $0x14c] sm:$0xf]
    %v141 = vld [vmem:[#allocation6 + $0x150] sm:$0xf]
    %v142 = vld [vmem:[#allocation6 + $0x154] sm:$0xf]
    %v143 = vld [vmem:[#allocation6 + $0x158] sm:$0xf]
    %v144 = vld [vmem:[#allocation6 + $0x15c] sm:$0xf]
    %v145 = vld [vmem:[#allocation6 + $0x160] sm:$0xf]
    %v146 = vld [vmem:[#allocation6 + $0x164] sm:$0xf]
    %v147 = vld [vmem:[#allocation6 + $0x168] sm:$0xf]
    %v148 = vld [vmem:[#allocation6 + $0x16c] sm:$0xf]
    %v149 = vld [vmem:[#allocation6 + $0x170] sm:$0xf]
    %v150 = vld [vmem:[#allocation6 + $0x174] sm:$0xf]
    %v151 = vld [vmem:[#allocation6 + $0x178] sm:$0xf]
    %v152 = vld [vmem:[#allocation6 + $0x17c] sm:$0xf]
    %v156 = vunpack.c.l.b16 %v54
    %v157 = vunpack.c.h.b16 %v54
    %v158 = vunpack.c.l.b16 %v55
    %v159 = vunpack.c.h.b16 %v55
    %v160 = vunpack.c.l.b16 %v56
    %v161 = vunpack.c.h.b16 %v56
    %v162 = vpack.c.b16 %v156, %v156
    %v163 = vpack.c.b16 %v157, %v157
    %v164 = vpack.c.b16 %v158, %v158
    %v165 = vpack.c.b16 %v159, %v159
    %v166 = vpack.c.b16 %v160, %v160
    %v167 = vpack.c.b16 %v161, %v161
    %v270 = vunpack.c.l.b16 %v57
    %v271 = vunpack.c.l.b16 %v58
    %v272 = vunpack.c.l.b16 %v59
    %v273 = vunpack.c.l.b16 %v60
    %v274 = vunpack.c.l.b16 %v61
    %v275 = vunpack.c.l.b16 %v62
    %v276 = vunpack.c.l.b16 %v63
    %v277 = vunpack.c.l.b16 %v64
    %v278 = vunpack.c.l.b16 %v65
    %v279 = vunpack.c.l.b16 %v66
    %v280 = vunpack.c.l.b16 %v67
    %v281 = vunpack.c.l.b16 %v68
    %v282 = vunpack.c.l.b16 %v69
    %v283 = vunpack.c.l.b16 %v70
    %v284 = vunpack.c.l.b16 %v71
    %v285 = vunpack.c.l.b16 %v72
    %v286 = vunpack.c.l.b16 %v73
    %v287 = vunpack.c.l.b16 %v74
    %v288 = vunpack.c.l.b16 %v75
    %v289 = vunpack.c.l.b16 %v76
    %v290 = vunpack.c.l.b16 %v77
    %v291 = vunpack.c.l.b16 %v78
    %v292 = vunpack.c.l.b16 %v79
    %v293 = vunpack.c.l.b16 %v80
    %v294 = vunpack.c.l.b16 %v81
    %v295 = vunpack.c.l.b16 %v82
    %v296 = vunpack.c.l.b16 %v83
    %v297 = vunpack.c.l.b16 %v84
    %v298 = vunpack.c.l.b16 %v85
    %v299 = vunpack.c.l.b16 %v86
    %v300 = vunpack.c.l.b16 %v87
    %v301 = vunpack.c.l.b16 %v88
    %v302 = vunpack.c.l.b16 %v89
    %v303 = vunpack.c.l.b16 %v90
    %v304 = vunpack.c.l.b16 %v91
    %v305 = vunpack.c.l.b16 %v92
    %v306 = vunpack.c.l.b16 %v93
    %v307 = vunpack.c.l.b16 %v94
    %v308 = vunpack.c.l.b16 %v95
    %v309 = vunpack.c.l.b16 %v96
    %v310 = vunpack.c.l.b16 %v97
    %v311 = vunpack.c.l.b16 %v98
    %v312 = vunpack.c.l.b16 %v99
    %v313 = vunpack.c.l.b16 %v100
    %v314 = vunpack.c.l.b16 %v101
    %v315 = vunpack.c.l.b16 %v102
    %v316 = vunpack.c.l.b16 %v103
    %v317 = vunpack.c.l.b16 %v104
    %v318 = vunpack.c.l.b16 %v105
    %v319 = vunpack.c.l.b16 %v106
    %v320 = vunpack.c.l.b16 %v107
    %v321 = vunpack.c.l.b16 %v108
    %v322 = vunpack.c.l.b16 %v109
    %v323 = vunpack.c.l.b16 %v110
    %v324 = vunpack.c.l.b16 %v111
    %v325 = vunpack.c.l.b16 %v112
    %v326 = vunpack.c.l.b16 %v113
    %v327 = vunpack.c.l.b16 %v114
    %v328 = vunpack.c.l.b16 %v115
    %v329 = vunpack.c.l.b16 %v116
    %v330 = vunpack.c.l.b16 %v117
    %v331 = vunpack.c.l.b16 %v118
    %v332 = vunpack.c.l.b16 %v119
    %v333 = vunpack.c.l.b16 %v120
    %v334 = vunpack.c.l.b16 %v121
    %v335 = vunpack.c.l.b16 %v122
    %v336 = vunpack.c.l.b16 %v123
    %v337 = vunpack.c.l.b16 %v124
    %v338 = vunpack.c.l.b16 %v125
    %v339 = vunpack.c.l.b16 %v126
    %v340 = vunpack.c.l.b16 %v127
    %v341 = vunpack.c.l.b16 %v128
    %v342 = vunpack.c.l.b16 %v129
    %v343 = vunpack.c.l.b16 %v130
    %v344 = vunpack.c.l.b16 %v131
    %v345 = vunpack.c.l.b16 %v132
    %v346 = vunpack.c.l.b16 %v133
    %v347 = vunpack.c.l.b16 %v134
    %v348 = vunpack.c.l.b16 %v135
    %v349 = vunpack.c.l.b16 %v136
    %v350 = vunpack.c.l.b16 %v137
    %v351 = vunpack.c.l.b16 %v138
    %v352 = vunpack.c.l.b16 %v139
    %v353 = vunpack.c.l.b16 %v140
    %v354 = vunpack.c.l.b16 %v141
    %v355 = vunpack.c.l.b16 %v142
    %v356 = vunpack.c.l.b16 %v143
    %v357 = vunpack.c.l.b16 %v144
    %v358 = vunpack.c.l.b16 %v145
    %v359 = vunpack.c.l.b16 %v146
    %v360 = vunpack.c.l.b16 %v147
    %v361 = vunpack.c.l.b16 %v148
    %v362 = vunpack.c.l.b16 %v149
    %v363 = vunpack.c.l.b16 %v150
    %v364 = vunpack.c.l.b16 %v151
    %v365 = vunpack.c.l.b16 %v152
    %v366 = vpack.c.b16 %v271, %v270
    %v367 = vpack.c.b16 %v273, %v272
    %v368 = vpack.c.b16 %v275, %v274
    %v369 = vpack.c.b16 %v277, %v276
    %v370 = vpack.c.b16 %v279, %v278
    %v371 = vpack.c.b16 %v281, %v280
    %v372 = vpack.c.b16 %v283, %v282
    %v373 = vpack.c.b16 %v285, %v284
    %v374 = vpack.c.b16 %v287, %v286
    %v375 = vpack.c.b16 %v289, %v288
    %v376 = vpack.c.b16 %v291, %v290
    %v377 = vpack.c.b16 %v293, %v292
    %v378 = vpack.c.b16 %v295, %v294
    %v379 = vpack.c.b16 %v297, %v296
    %v380 = vpack.c.b16 %v299, %v298
    %v381 = vpack.c.b16 %v301, %v300
    %v382 = vpack.c.b16 %v303, %v302
    %v383 = vpack.c.b16 %v305, %v304
    %v384 = vpack.c.b16 %v307, %v306
    %v385 = vpack.c.b16 %v309, %v308
    %v386 = vpack.c.b16 %v311, %v310
    %v387 = vpack.c.b16 %v313, %v312
    %v388 = vpack.c.b16 %v315, %v314
    %v389 = vpack.c.b16 %v317, %v316
    %v390 = vpack.c.b16 %v319, %v318
    %v391 = vpack.c.b16 %v321, %v320
    %v392 = vpack.c.b16 %v323, %v322
    %v393 = vpack.c.b16 %v325, %v324
    %v394 = vpack.c.b16 %v327, %v326
    %v395 = vpack.c.b16 %v329, %v328
    %v396 = vpack.c.b16 %v331, %v330
    %v397 = vpack.c.b16 %v333, %v332
    %v398 = vpack.c.b16 %v335, %v334
    %v399 = vpack.c.b16 %v337, %v336
    %v400 = vpack.c.b16 %v339, %v338
    %v401 = vpack.c.b16 %v341, %v340
    %v402 = vpack.c.b16 %v343, %v342
    %v403 = vpack.c.b16 %v345, %v344
    %v404 = vpack.c.b16 %v347, %v346
    %v405 = vpack.c.b16 %v349, %v348
    %v406 = vpack.c.b16 %v351, %v350
    %v407 = vpack.c.b16 %v353, %v352
    %v408 = vpack.c.b16 %v355, %v354
    %v409 = vpack.c.b16 %v357, %v356
    %v410 = vpack.c.b16 %v359, %v358
    %v411 = vpack.c.b16 %v361, %v360
    %v412 = vpack.c.b16 %v363, %v362
    %v413 = vpack.c.b16 %v365, %v364
    %462 = vmatprep.subr.bf16.mxu0 0
    %463 = vmatpush1.bf16.msra.mxu0 %v373
    %464 = vmatprep.subr.bf16.mxu0 0
    %465 = vmatpush1.bf16.msra.mxu0 %v372
    %466 = vmatprep.subr.bf16.mxu0 0
    %467 = vmatpush1.bf16.msra.mxu0 %v371
    %468 = vmatprep.subr.bf16.mxu0 0
    %469 = vmatpush1.bf16.msra.mxu0 %v370
    %470 = vmatprep.subr.bf16.mxu0 0
    %471 = vmatpush1.bf16.msra.mxu0 %v369
    %472 = vmatprep.subr.bf16.mxu0 0
    %473 = vmatpush1.bf16.msra.mxu0 %v368
    %474 = vmatprep.subr.bf16.mxu0 0
    %475 = vmatpush1.bf16.msra.mxu0 %v367
    %476 = vmatprep.subr.bf16.mxu0 0
    %477 = vmatpush1.bf16.msra.mxu0 %v366
    %478 = vmatprep.subr.bf16.mxu0 0
    %479 = vmatpush2.bf16.msra.mxu0 %v381
    %480 = vmatprep.subr.bf16.mxu0 0
    %481 = vmatpush2.bf16.msra.mxu0 %v380
    %482 = vmatprep.subr.bf16.mxu0 0
    %483 = vmatpush2.bf16.msra.mxu0 %v379
    %484 = vmatprep.subr.bf16.mxu0 0
    %485 = vmatpush2.bf16.msra.mxu0 %v378
    %486 = vmatprep.subr.bf16.mxu0 0
    %487 = vmatpush2.bf16.msra.mxu0 %v377
    %488 = vmatprep.subr.bf16.mxu0 0
    %489 = vmatpush2.bf16.msra.mxu0 %v376
    %490 = vmatprep.subr.bf16.mxu0 0
    %491 = vmatpush2.bf16.msra.mxu0 %v375
    %492 = vmatprep.subr.bf16.mxu0 0
    %493 = vmatpush2.bf16.msra.mxu0 %v374
    %494 = vmatprep.mubr.bf16.mxu0 %v163
    %495 = vmatmul.mubr.bf16.gmra.mxu0 %v162
    %v496 = vpop.f32.mrf.mxu0
    %v497 = vadd.f32 0.0, %v496
    %v498 = vpop.f32.mrf.mxu0
    %v499 = vpop.f32.mrf.mxu0
    %v500 = vpop.f32.mrf.mxu0
    %501 = vdwg.mxu0
    %502 = vmatprep.subr.bf16.mxu0 0
    %503 = vmatpush1.bf16.msra.mxu0 %v389
    %504 = vmatprep.subr.bf16.mxu0 0
    %505 = vmatpush1.bf16.msra.mxu0 %v388
    %506 = vmatprep.subr.bf16.mxu0 0
    %507 = vmatpush1.bf16.msra.mxu0 %v387
    %508 = vmatprep.subr.bf16.mxu0 0
    %509 = vmatpush1.bf16.msra.mxu0 %v386
    %510 = vmatprep.subr.bf16.mxu0 0
    %511 = vmatpush1.bf16.msra.mxu0 %v385
    %512 = vmatprep.subr.bf16.mxu0 0
    %513 = vmatpush1.bf16.msra.mxu0 %v384
    %514 = vmatprep.subr.bf16.mxu0 0
    %515 = vmatpush1.bf16.msra.mxu0 %v383
    %516 = vmatprep.subr.bf16.mxu0 0
    %517 = vmatpush1.bf16.msra.mxu0 %v382
    %518 = vmatprep.subr.bf16.mxu0 0
    %519 = vmatpush2.bf16.msra.mxu0 %v397
    %520 = vmatprep.subr.bf16.mxu0 0
    %521 = vmatpush2.bf16.msra.mxu0 %v396
    %522 = vmatprep.subr.bf16.mxu0 0
    %523 = vmatpush2.bf16.msra.mxu0 %v395
    %524 = vmatprep.subr.bf16.mxu0 0
    %525 = vmatpush2.bf16.msra.mxu0 %v394
    %526 = vmatprep.subr.bf16.mxu0 0
    %527 = vmatpush2.bf16.msra.mxu0 %v393
    %528 = vmatprep.subr.bf16.mxu0 0
    %529 = vmatpush2.bf16.msra.mxu0 %v392
    %530 = vmatprep.subr.bf16.mxu0 0
    %531 = vmatpush2.bf16.msra.mxu0 %v391
    %532 = vmatprep.subr.bf16.mxu0 0
    %533 = vmatpush2.bf16.msra.mxu0 %v390
    %534 = vmatprep.mubr.bf16.mxu0 %v165
    %535 = vmatmul.mubr.bf16.gmra.mxu0 %v164
    %v536 = vpop.f32.mrf.mxu0
    %v537 = vadd.f32 %v497, %v536
    %v538 = vpop.f32.mrf.mxu0
    %v539 = vpop.f32.mrf.mxu0
    %v540 = vpop.f32.mrf.mxu0
    %541 = vdwg.mxu0
    %542 = vmatprep.subr.bf16.mxu0 0
    %543 = vmatpush1.bf16.msra.mxu0 %v405
    %544 = vmatprep.subr.bf16.mxu0 0
    %545 = vmatpush1.bf16.msra.mxu0 %v404
    %546 = vmatprep.subr.bf16.mxu0 0
    %547 = vmatpush1.bf16.msra.mxu0 %v403
    %548 = vmatprep.subr.bf16.mxu0 0
    %549 = vmatpush1.bf16.msra.mxu0 %v402
    %550 = vmatprep.subr.bf16.mxu0 0
    %551 = vmatpush1.bf16.msra.mxu0 %v401
    %552 = vmatprep.subr.bf16.mxu0 0
    %553 = vmatpush1.bf16.msra.mxu0 %v400
    %554 = vmatprep.subr.bf16.mxu0 0
    %555 = vmatpush1.bf16.msra.mxu0 %v399
    %556 = vmatprep.subr.bf16.mxu0 0
    %557 = vmatpush1.bf16.msra.mxu0 %v398
    %558 = vmatprep.subr.bf16.mxu0 0
    %559 = vmatpush2.bf16.msra.mxu0 %v413
    %560 = vmatprep.subr.bf16.mxu0 0
    %561 = vmatpush2.bf16.msra.mxu0 %v412
    %562 = vmatprep.subr.bf16.mxu0 0
    %563 = vmatpush2.bf16.msra.mxu0 %v411
    %564 = vmatprep.subr.bf16.mxu0 0
    %565 = vmatpush2.bf16.msra.mxu0 %v410
    %566 = vmatprep.subr.bf16.mxu0 0
    %567 = vmatpush2.bf16.msra.mxu0 %v409
    %568 = vmatprep.subr.bf16.mxu0 0
    %569 = vmatpush2.bf16.msra.mxu0 %v408
    %570 = vmatprep.subr.bf16.mxu0 0
    %571 = vmatpush2.bf16.msra.mxu0 %v407
    %572 = vmatprep.subr.bf16.mxu0 0
    %573 = vmatpush2.bf16.msra.mxu0 %v406
    %574 = vmatprep.mubr.bf16.mxu0 %v167
    %575 = vmatmul.mubr.bf16.gmra.mxu0 %v166
    %v576 = vpop.f32.mrf.mxu0
    %v577 = vadd.f32 %v537, %v576
    %v578 = vpop.f32.mrf.mxu0
    %v579 = vpop.f32.mrf.mxu0
    %v580 = vpop.f32.mrf.mxu0
    %581 = vdwg.mxu0
    %v582 = vadd.f32 %v53, %v577
    %583 = vst [vmem:[#allocation2] sm:$0xff] %v582
    // Predicated region
    $region34: #{tpu_custom_call.1} parent=1 // pred_check
      %p584 = pneg %p48
    $region35: #{tpu_custom_call.1} parent=1 // pred_check_branch
      %586 = sbr.rel (%p584) target = $region37
    $region36: #{tpu_custom_call.1} parent=1 // pred_region
      %v587 = vld [vmem:[#allocation2] sm:$0xff]
      %v588 = vld [vmem:[%s2] sm:$0x1]
      %v590 = vlaneseq
      %v591 = vshrl.u32 %v590, 7
      %v592 = vsub.s32 0, %v591
      %v593 = vrot.slane %v588, %v592
      %v595 = vadd.f32 %v587, %v593
      %vm596 = vcmp.ge.f32.partialorder %v595, 0.0
      %v597 = vmul.f32 %v595, 0.2
      %v598 = vsel %vm596, %v595, %v597
      %v599 = vld [vmem:[%s3] sm:$0x1]
      %v601 = vlaneseq
      %v602 = vshrl.u32 %v601, 7
      %v603 = vsub.s32 0, %v602
      %v604 = vrot.slane %v599, %v603
      %v606 = vmul.f32 %v598, %v604
      %607 = vadd.xlane.f32.xlu0 %v606
      %v608 = vpop.xlane.xlu0 %607
      %s609 = sld [smem:[#allocation3]]
      %v610 = vstv %s609
      %v611 = vadd.f32 %v608, %v610
      %vm612 = vcmask 7168
      %613 = vst.msk [vmem:[%s5] sm:$0xff] %vm612, %v611
    $region37: #{tpu_custom_call.1} parent=1 // pred_fallthru
      _
    // Predicated region
    $region38: #{tpu_custom_call.1} parent=1 // pred_check
      _
    $region39: #{tpu_custom_call.1} parent=1 // pred_check_branch
      %615 = sbr.rel (0) target = $region41
    $region40: #{tpu_custom_call.1} parent=1 // pred_region
      _
    $region41: #{tpu_custom_call.1} parent=1 // pred_fallthru
      _
    // Predicated region
    $region42: #{tpu_custom_call.1} parent=1 // pred_check
      _
    $region43: #{tpu_custom_call.1} parent=1 // pred_check_branch
      %617 = sbr.rel (0) target = $region45
    $region44: #{tpu_custom_call.1} parent=1 // pred_region
      _
    $region45: #{tpu_custom_call.1} parent=1 // pred_fallthru
      _
    %618 = vsyncpa [#allocation5], 1
    %619 = vsyncpa [#allocation7], 1

</llo_original>
